<compile_context>
chip_gen: v7x
topology: tpu7x:2x2x1
jax: 0.10.0
libtpu: 0.0.40
codegen_flags: <defaults>
</compile_context>

<pallas_src>
import math
import jax
import jax.numpy as jnp
from jax.experimental import pallas as pl
from jax.experimental.pallas import tpu as pltpu


def _round_up(x, m):
    return ((x + m - 1) // m) * m


def mlp_kernel(x_ref, w1_ref, b1_ref, w2_ref, b2_ref, w3_ref, b3_ref, o_ref):
    x = x_ref[...]
    if x.dtype != jnp.float32:        # static at trace time; bf16 inputs are
        x = x.astype(jnp.float32)     # cast AFTER the (halved) HBM load.
    # fc1 + ReLU
    h1 = jnp.dot(x, w1_ref[...], preferred_element_type=jnp.float32)
    h1 = jnp.maximum(h1 + b1_ref[...], 0.0)
    # fc2 + ReLU
    h2 = jnp.dot(h1, w2_ref[...], preferred_element_type=jnp.float32)
    h2 = jnp.maximum(h2 + b2_ref[...], 0.0)
    # fc3 + Sigmoid
    z3 = jnp.dot(h2, w3_ref[...], preferred_element_type=jnp.float32)
    o_ref[...] = jax.nn.sigmoid(z3 + b3_ref[...]).astype(o_ref.dtype)


def init_params(key, x_dim):
    """Mimics PyTorch nn.Linear default init: U(-1/sqrt(fan_in), 1/sqrt(fan_in)).
    Weights stored [in_features, out_features] (transpose of PyTorch layout)."""
    dims = [(3 * x_dim, 8), (8, 8), (8, x_dim)]
    params = {}
    for i, (fan_in, fan_out) in enumerate(dims, start=1):
        key, kw, kb = jax.random.split(key, 3)
        bound = 1.0 / math.sqrt(fan_in)
        params[f"w{i}"] = jax.random.uniform(
            kw, (fan_in, fan_out), jnp.float32, -bound, bound)
        params[f"b{i}"] = jax.random.uniform(
            kb, (1, fan_out), jnp.float32, -bound, bound)
    return params


def pack_params(params, x_dim, *, max_group=16):
    """Fold G batch rows into the lane axis.

    With block-diagonal weights W_blk = I_G (x) W and G-tiled biases, computing
    the MLP on x reshaped to (B/G, G*3*x_dim) yields exactly the original
    per-row results laid out row-major in (B/G, G*x_dim): the extra MAC terms
    are exact zeros, so numerics are unchanged.

    Guard: for unfriendly x_dim (e.g. odd -> ideal G=128) the kron expansion
    grows as G^2 in weight bytes and would blow past scoped VMEM; cap G.  A
    capped G stays exactly correct (the BlockSpecs cover the full last dim),
    only the stores lose full lane density.
    """
    G = 128 // math.gcd(x_dim, 128)
    if G > max_group:
        G = max_group
    # NOTE: on v5e, storing the packed weights in bf16 (keeping f32 accumulate)
    # would cut MXU time for the redundant kron MACs; kept f32 here to preserve
    # the exact 1e-5 reference tolerance (kernel stays DMA-bound regardless).

    def bd(w):      # (fi, fo) -> (G*fi, G*fo) block diagonal
        return jnp.kron(jnp.eye(G, dtype=w.dtype), w)

    def tile_b(b):  # (1, fo) -> (1, G*fo)
        return jnp.tile(b, (1, G))

    return {
        "group": G, "x_dim": x_dim,
        "w1": bd(params["w1"]), "b1": tile_b(params["b1"]),
        "w2": bd(params["w2"]), "b2": tile_b(params["b2"]),
        "w3": bd(params["w3"]), "b3": tile_b(params["b3"]),
    }


def net_forward(x, packed, *, tile_rows=2048, vmem_limit_bytes=32 * 1024 * 1024):
    """x: [B, 3*x_dim] f32 or bf16.  packed: pack_params() output.  Returns [B, x_dim] f32."""
    B, in_feats = x.shape
    G = packed["group"]
    x_dim = packed["x_dim"]
    assert in_feats == 3 * x_dim
    d_in_g = G * in_feats          # grouped input lane width  (e.g. 384)
    d_out_g = G * x_dim            # grouped output lane width (e.g. 128)
    h_g = packed["w2"].shape[0]    # grouped hidden width (G * 8)

    itemsize = jnp.dtype(x.dtype).itemsize
    sub = 8 * (4 // itemsize)      # sublane packing: 8 rows f32, 16 rows bf16

    # Minimal padding only: up to a multiple of (sub * G) batch rows so the
    # grouping reshape is exact and grouped rows are sublane-aligned.  No
    # tile-granular padding: grid uses pl.cdiv and the ragged last block is
    # masked by Pallas, so aligned batches incur zero pad copy / extra traffic.
    B_pad = _round_up(B, sub * G)
    if B_pad != B:
        x = jnp.pad(x, ((0, B_pad - B), (0, 0)))
    rows = B_pad // G
    xg = x.reshape(rows, d_in_g)               # free row-major relayout

    tile_rows = max(sub, _round_up(min(tile_rows, rows), sub))
    grid = (pl.cdiv(rows, tile_rows),)
    full = lambda i: (0, 0)                    # weights: resident in VMEM

    flops = 2 * rows * (d_in_g * h_g + h_g * h_g + h_g * d_out_g)
    bytes_accessed = (itemsize * rows * d_in_g + 4 * rows * d_out_g
                      + 4 * (d_in_g * h_g + h_g * h_g + h_g * d_out_g
                             + 2 * h_g + d_out_g))

    out = pl.pallas_call(
        mlp_kernel,
        out_shape=jax.ShapeDtypeStruct((rows, d_out_g), jnp.float32),
        grid_spec=pltpu.PrefetchScalarGridSpec(
            num_scalar_prefetch=0,
            grid=grid,
            in_specs=[
                pl.BlockSpec((tile_rows, d_in_g), lambda i: (i, 0)),  # x tile
                pl.BlockSpec((d_in_g, h_g), full),                    # w1 (block-diag)
                pl.BlockSpec((1, h_g), full),                         # b1
                pl.BlockSpec((h_g, h_g), full),                       # w2
                pl.BlockSpec((1, h_g), full),                         # b2
                pl.BlockSpec((h_g, d_out_g), full),                   # w3
                pl.BlockSpec((1, d_out_g), full),                     # b3
            ],
            out_specs=pl.BlockSpec((tile_rows, d_out_g), lambda i: (i, 0)),
        ),
        compiler_params=pltpu.CompilerParams(
            dimension_semantics=("parallel",),       # v7x: 2 TCs; try CORE_PARALLEL if profile shows 1
            vmem_limit_bytes=vmem_limit_bytes),
        cost_estimate=pl.CostEstimate(
            flops=flops,
            transcendentals=rows * d_out_g,
            bytes_accessed=bytes_accessed),
    )(xg, packed["w1"], packed["b1"], packed["w2"], packed["b2"],
      packed["w3"], packed["b3"])

    return out.reshape(B_pad, x_dim)[:B]


def reference_forward(x, p):
    h1 = jnp.maximum(x @ p["w1"] + p["b1"], 0.0)
    h2 = jnp.maximum(h1 @ p["w2"] + p["b2"], 0.0)
    return jax.nn.sigmoid(h2 @ p["w3"] + p["b3"])


if __name__ == "__main__":
    x_dim = 16
    key = jax.random.PRNGKey(0)
    key, k_params = jax.random.split(key)
    params = init_params(k_params, x_dim)
    packed = pack_params(params, x_dim)

    # 1. Small single-tile case.
    key, kx = jax.random.split(key)
    x_small = jax.random.normal(kx, (8, 3 * x_dim), jnp.float32)
    out_small = jax.block_until_ready(net_forward(x_small, packed))
    ref_small = reference_forward(x_small, params)
    assert out_small.shape == (8, x_dim)
    assert jnp.allclose(out_small, ref_small, atol=1e-5, rtol=1e-5)

    # 2. Unaligned batch: minimal padding only (3000 -> 3008 rows -> 376 grouped).
    key, kx2 = jax.random.split(key)
    x_mid = jax.random.normal(kx2, (3000, 3 * x_dim), jnp.float32)
    out_mid = jax.block_until_ready(net_forward(x_mid, packed))
    ref_mid = reference_forward(x_mid, params)
    assert out_mid.shape == (3000, x_dim)
    assert jnp.allclose(out_mid, ref_mid, atol=1e-5, rtol=1e-5)

    # 3. Multi-tile grid with ragged (masked) last block:
    #    20000 rows -> 2504 grouped rows -> grid=(2,) at tile_rows=2048.
    key, kx3 = jax.random.split(key)
    x_big = jax.random.normal(kx3, (20000, 3 * x_dim), jnp.float32)
    out_big = jax.block_until_ready(net_forward(x_big, packed))
    ref_big = reference_forward(x_big, params)
    assert out_big.shape == (20000, x_dim)
    assert jnp.allclose(out_big, ref_big, atol=1e-5, rtol=1e-5)

    # 4. bf16 activations (halves input HBM bytes on this HBM-bound kernel).
    #    The cast here only exercises the path; in real use the producer should
    #    emit bf16 directly.  Tolerance relaxed for the bf16 quantization.
    x_bf16 = x_mid.astype(jnp.bfloat16)
    out_bf16 = jax.block_until_ready(net_forward(x_bf16, packed))
    ref_bf16 = reference_forward(x_bf16.astype(jnp.float32), params)
    assert out_bf16.shape == (3000, x_dim)
    assert jnp.allclose(out_bf16, ref_bf16, atol=1e-2, rtol=1e-2)

    print("KERNEL_OK")
</pallas_src>

<mosaic_0001>
module attributes {stable_mosaic.version = 11 : i64} {
  func.func @mlp_kernel(%arg0: i32, %arg1: memref<8x384xf32, #tpu.memory_space<vmem>>, %arg2: memref<384x64xf32, #tpu.memory_space<vmem>>, %arg3: memref<1x64xf32, #tpu.memory_space<vmem>>, %arg4: memref<64x64xf32, #tpu.memory_space<vmem>>, %arg5: memref<1x64xf32, #tpu.memory_space<vmem>>, %arg6: memref<64x128xf32, #tpu.memory_space<vmem>>, %arg7: memref<1x128xf32, #tpu.memory_space<vmem>>, %arg8: memref<8x128xf32, #tpu.memory_space<vmem>>) attributes {dimension_semantics = [#tpu.dimension_semantics<parallel>], iteration_bounds = array<i64: 1>, scalar_prefetch = 0 : i64, scratch_operands = 0 : i64, tpu.core_type = #tpu.core_type<tc>, window_params = [{transform_indices = @transform_0, window_bounds = array<i64: 8, 384>}, {pipeline_mode = #tpu.pipeline_mode<synchronous>, transform_indices = @transform_1, window_bounds = array<i64: 384, 64>}, {pipeline_mode = #tpu.pipeline_mode<synchronous>, transform_indices = @transform_2, window_bounds = array<i64: 1, 64>}, {pipeline_mode = #tpu.pipeline_mode<synchronous>, transform_indices = @transform_3, window_bounds = array<i64: 64, 64>}, {pipeline_mode = #tpu.pipeline_mode<synchronous>, transform_indices = @transform_4, window_bounds = array<i64: 1, 64>}, {pipeline_mode = #tpu.pipeline_mode<synchronous>, transform_indices = @transform_5, window_bounds = array<i64: 64, 128>}, {pipeline_mode = #tpu.pipeline_mode<synchronous>, transform_indices = @transform_6, window_bounds = array<i64: 1, 128>}, {transform_indices = @transform_7, window_bounds = array<i64: 8, 128>}]} {
    %c0 = arith.constant 0 : index
    %c0_0 = arith.constant 0 : index
    %0 = vector.load %arg1[%c0, %c0_0] : memref<8x384xf32, #tpu.memory_space<vmem>>, vector<8x384xf32>
    %c0_1 = arith.constant 0 : index
    %c0_2 = arith.constant 0 : index
    %1 = vector.load %arg2[%c0_1, %c0_2] : memref<384x64xf32, #tpu.memory_space<vmem>>, vector<384x64xf32>
    %cst = arith.constant dense<0.000000e+00> : vector<8x64xf32>
    %2 = tpu.matmul %0, %1, %cst {dimension_numbers = #tpu.dot_dimension_numbers<[1], [0], [0], [1], [0, 0, 1, 1], [], []>} : vector<8x384xf32>, vector<384x64xf32>, vector<8x64xf32> -> vector<8x64xf32>
    %c0_3 = arith.constant 0 : index
    %c0_4 = arith.constant 0 : index
    %3 = vector.load %arg3[%c0_3, %c0_4] : memref<1x64xf32, #tpu.memory_space<vmem>>, vector<1x64xf32>
    %4 = vector.broadcast %3 : vector<1x64xf32> to vector<8x64xf32>
    %5 = arith.addf %2, %4 : vector<8x64xf32>
    %cst_5 = arith.constant 0.000000e+00 : f32
    %6 = vector.broadcast %cst_5 : f32 to vector<8x64xf32>
    %7 = arith.maximumf %5, %6 : vector<8x64xf32>
    %c0_6 = arith.constant 0 : index
    %c0_7 = arith.constant 0 : index
    %8 = vector.load %arg4[%c0_6, %c0_7] : memref<64x64xf32, #tpu.memory_space<vmem>>, vector<64x64xf32>
    %cst_8 = arith.constant dense<0.000000e+00> : vector<8x64xf32>
    %9 = tpu.matmul %7, %8, %cst_8 {dimension_numbers = #tpu.dot_dimension_numbers<[1], [0], [0], [1], [0, 0, 1, 1], [], []>} : vector<8x64xf32>, vector<64x64xf32>, vector<8x64xf32> -> vector<8x64xf32>
    %c0_9 = arith.constant 0 : index
    %c0_10 = arith.constant 0 : index
    %10 = vector.load %arg5[%c0_9, %c0_10] : memref<1x64xf32, #tpu.memory_space<vmem>>, vector<1x64xf32>
    %11 = vector.broadcast %10 : vector<1x64xf32> to vector<8x64xf32>
    %12 = arith.addf %9, %11 : vector<8x64xf32>
    %cst_11 = arith.constant 0.000000e+00 : f32
    %13 = vector.broadcast %cst_11 : f32 to vector<8x64xf32>
    %14 = arith.maximumf %12, %13 : vector<8x64xf32>
    %c0_12 = arith.constant 0 : index
    %c0_13 = arith.constant 0 : index
    %15 = vector.load %arg6[%c0_12, %c0_13] : memref<64x128xf32, #tpu.memory_space<vmem>>, vector<64x128xf32>
    %cst_14 = arith.constant dense<0.000000e+00> : vector<8x128xf32>
    %16 = tpu.matmul %14, %15, %cst_14 {dimension_numbers = #tpu.dot_dimension_numbers<[1], [0], [0], [1], [0, 0, 1, 1], [], []>} : vector<8x64xf32>, vector<64x128xf32>, vector<8x128xf32> -> vector<8x128xf32>
    %c0_15 = arith.constant 0 : index
    %c0_16 = arith.constant 0 : index
    %17 = vector.load %arg7[%c0_15, %c0_16] : memref<1x128xf32, #tpu.memory_space<vmem>>, vector<1x128xf32>
    %18 = vector.broadcast %17 : vector<1x128xf32> to vector<8x128xf32>
    %19 = arith.addf %16, %18 : vector<8x128xf32>
    %20 = arith.negf %19 : vector<8x128xf32>
    %21 = math.exp %20 : vector<8x128xf32>
    %cst_17 = arith.constant 1.000000e+00 : f32
    %22 = vector.broadcast %cst_17 : f32 to vector<8x128xf32>
    %23 = arith.addf %22, %21 : vector<8x128xf32>
    %24 = arith.divf %22, %23 : vector<8x128xf32>
    %c0_18 = arith.constant 0 : index
    %c0_19 = arith.constant 0 : index
    %25 = vector.load %arg8[%c0_18, %c0_19] : memref<8x128xf32, #tpu.memory_space<vmem>>, vector<8x128xf32>
    tpu.vector_store %arg8[%c0_18, %c0_19], %24 {strides = array<i32>} : memref<8x128xf32, #tpu.memory_space<vmem>>, vector<8x128xf32>,
    return
  }
  func.func @transform_0(%arg0: i32) -> (i32, i32) {
    %c0_i32 = arith.constant 0 : i32
    %c0_i32_0 = arith.constant 0 : i32
    return %arg0, %c0_i32 : i32, i32
  }
  func.func @transform_1(%arg0: i32) -> (i32, i32) {
    %c0_i32 = arith.constant 0 : i32
    %c0_i32_0 = arith.constant 0 : i32
    %c0_i32_1 = arith.constant 0 : i32
    return %c0_i32, %c0_i32_0 : i32, i32
  }
  func.func @transform_2(%arg0: i32) -> (i32, i32) {
    %c0_i32 = arith.constant 0 : i32
    %c0_i32_0 = arith.constant 0 : i32
    %c0_i32_1 = arith.constant 0 : i32
    return %c0_i32, %c0_i32_0 : i32, i32
  }
  func.func @transform_3(%arg0: i32) -> (i32, i32) {
    %c0_i32 = arith.constant 0 : i32
    %c0_i32_0 = arith.constant 0 : i32
    %c0_i32_1 = arith.constant 0 : i32
    return %c0_i32, %c0_i32_0 : i32, i32
  }
  func.func @transform_4(%arg0: i32) -> (i32, i32) {
    %c0_i32 = arith.constant 0 : i32
    %c0_i32_0 = arith.constant 0 : i32
    %c0_i32_1 = arith.constant 0 : i32
    return %c0_i32, %c0_i32_0 : i32, i32
  }
  func.func @transform_5(%arg0: i32) -> (i32, i32) {
    %c0_i32 = arith.constant 0 : i32
    %c0_i32_0 = arith.constant 0 : i32
    %c0_i32_1 = arith.constant 0 : i32
    return %c0_i32, %c0_i32_0 : i32, i32
  }
  func.func @transform_6(%arg0: i32) -> (i32, i32) {
    %c0_i32 = arith.constant 0 : i32
    %c0_i32_0 = arith.constant 0 : i32
    %c0_i32_1 = arith.constant 0 : i32
    return %c0_i32, %c0_i32_0 : i32, i32
  }
  func.func @transform_7(%arg0: i32) -> (i32, i32) {
    %c0_i32 = arith.constant 0 : i32
    %c0_i32_0 = arith.constant 0 : i32
    return %arg0, %c0_i32 : i32, i32
  }
}

</mosaic_0001>

<llo_original>
// kernel: tpu_custom_call.1
$region0: #{tpu_custom_call.1}
  #allocation0 [shape = 'u32[]', space=smem, size = 0x4, offset = 0x4, fixed_abs, tag = 'smem constant byte address 0x4 - core index']
  #allocation1 [shape = 'u32[144,128]{1,0:T(1,128)}', space=vmem, size = 0x12000, scoped, tag = 'internal scratch']
  %s0 = inlined_call_operand.vmem [shape: f32[8,384], index: 0, kind: input, shape index: {}]
  %s1 = inlined_call_operand.vmem [shape: f32[384,64], index: 1, kind: input, shape index: {}]
  %s2 = inlined_call_operand.vmem [shape: f32[1,64], index: 2, kind: input, shape index: {}]
  %s3 = inlined_call_operand.vmem [shape: f32[64,64], index: 3, kind: input, shape index: {}]
  %s4 = inlined_call_operand.vmem [shape: f32[1,64], index: 4, kind: input, shape index: {}]
  %s5 = inlined_call_operand.vmem [shape: f32[64,128], index: 5, kind: input, shape index: {}]
  %s6 = inlined_call_operand.vmem [shape: f32[1,128], index: 6, kind: input, shape index: {}]
  %s7 = inlined_call_operand.hbm [shape: f32[8,128], index: 7, kind: output, shape index: {}]
  %s8 = sld [smem:[#allocation0]]
  $region38: #{tpu_custom_call.1} parent=0
    _
  %s10 = ssub.s32 1, %s8
  %s11 = scalar_select 0, %s10, %s8
  $region1: #{tpu_custom_call.1} parent=0
    #allocation2 [shape = 'u8[4096]{0}', space=vmem, size = 0x1000, scoped, tag = 'output window, operand 0, single buffered']
    #allocation3 [shape = 's32[1]{0}', space=sflag, size = 0x4, scoped, tag = 'scoped memory for tpu_custom_call.1']
    %12 = vsyncpa [#allocation3], 0
    // Predicated region
    $region2: #{tpu_custom_call.1} parent=1 // pred_check
      _
    $region3: #{tpu_custom_call.1} parent=1 // pred_check_branch
      %14 = sbr.rel (0) target = $region5
    $region4: #{tpu_custom_call.1} parent=1 // pred_region
      _
    $region5: #{tpu_custom_call.1} parent=1 // pred_fallthru
      _
    // Predicated region
    $region6: #{tpu_custom_call.1} parent=1 // pred_check
      _
    $region7: #{tpu_custom_call.1} parent=1 // pred_check_branch
      %16 = sbr.rel (0) target = $region9
    $region8: #{tpu_custom_call.1} parent=1 // pred_region
      _
    $region9: #{tpu_custom_call.1} parent=1 // pred_fallthru
      _
    // Predicated region
    $region10: #{tpu_custom_call.1} parent=1 // pred_check
      _
    $region11: #{tpu_custom_call.1} parent=1 // pred_check_branch
      %18 = sbr.rel (0) target = $region13
    $region12: #{tpu_custom_call.1} parent=1 // pred_region
      _
    $region13: #{tpu_custom_call.1} parent=1 // pred_fallthru
      _
    // Predicated region
    $region14: #{tpu_custom_call.1} parent=1 // pred_check
      _
    $region15: #{tpu_custom_call.1} parent=1 // pred_check_branch
      %20 = sbr.rel (0) target = $region17
    $region16: #{tpu_custom_call.1} parent=1 // pred_region
      _
    $region17: #{tpu_custom_call.1} parent=1 // pred_fallthru
      _
    // Predicated region
    $region18: #{tpu_custom_call.1} parent=1 // pred_check
      _
    $region19: #{tpu_custom_call.1} parent=1 // pred_check_branch
      %22 = sbr.rel (0) target = $region21
    $region20: #{tpu_custom_call.1} parent=1 // pred_region
      _
    $region21: #{tpu_custom_call.1} parent=1 // pred_fallthru
      _
    // Predicated region
    $region22: #{tpu_custom_call.1} parent=1 // pred_check
      _
    $region23: #{tpu_custom_call.1} parent=1 // pred_check_branch
      %24 = sbr.rel (0) target = $region25
    $region24: #{tpu_custom_call.1} parent=1 // pred_region
      _
    $region25: #{tpu_custom_call.1} parent=1 // pred_fallthru
      _
    // Predicated region
    $region26: #{tpu_custom_call.1} parent=1 // pred_check
      _
    $region27: #{tpu_custom_call.1} parent=1 // pred_check_branch
      %26 = sbr.rel (0) target = $region29
    $region28: #{tpu_custom_call.1} parent=1 // pred_region
      _
    $region29: #{tpu_custom_call.1} parent=1 // pred_fallthru
      _
    %v27 = vld [vmem:[%s0] sm:$0xff]
    %v28 = vld [vmem:[%s0 + $0x8] sm:$0xff]
    %v29 = vld [vmem:[%s0 + $0x10] sm:$0xff]
    %v30 = vld [vmem:[%s1] sm:$0xff]
    %v31 = vld [vmem:[%s1 + $0x8] sm:$0xff]
    %v32 = vld [vmem:[%s1 + $0x10] sm:$0xff]
    %v33 = vld [vmem:[%s1 + $0x18] sm:$0xff]
    %v34 = vld [vmem:[%s1 + $0x20] sm:$0xff]
    %v35 = vld [vmem:[%s1 + $0x28] sm:$0xff]
    %v36 = vld [vmem:[%s1 + $0x30] sm:$0xff]
    %v37 = vld [vmem:[%s1 + $0x38] sm:$0xff]
    %v38 = vld [vmem:[%s1 + $0x40] sm:$0xff]
    %v39 = vld [vmem:[%s1 + $0x48] sm:$0xff]
    %v40 = vld [vmem:[%s1 + $0x50] sm:$0xff]
    %v41 = vld [vmem:[%s1 + $0x58] sm:$0xff]
    %v42 = vld [vmem:[%s1 + $0x60] sm:$0xff]
    %v43 = vld [vmem:[%s1 + $0x68] sm:$0xff]
    %v44 = vld [vmem:[%s1 + $0x70] sm:$0xff]
    %v45 = vld [vmem:[%s1 + $0x78] sm:$0xff]
    %v46 = vld [vmem:[%s1 + $0x80] sm:$0xff]
    %v47 = vld [vmem:[%s1 + $0x88] sm:$0xff]
    %v48 = vld [vmem:[%s1 + $0x90] sm:$0xff]
    %v49 = vld [vmem:[%s1 + $0x98] sm:$0xff]
    %v50 = vld [vmem:[%s1 + $0xa0] sm:$0xff]
    %v51 = vld [vmem:[%s1 + $0xa8] sm:$0xff]
    %v52 = vld [vmem:[%s1 + $0xb0] sm:$0xff]
    %v53 = vld [vmem:[%s1 + $0xb8] sm:$0xff]
    %v54 = vld [vmem:[%s1 + $0xc0] sm:$0xff]
    %v55 = vld [vmem:[%s1 + $0xc8] sm:$0xff]
    %v56 = vld [vmem:[%s1 + $0xd0] sm:$0xff]
    %v57 = vld [vmem:[%s1 + $0xd8] sm:$0xff]
    %v58 = vld [vmem:[%s1 + $0xe0] sm:$0xff]
    %v59 = vld [vmem:[%s1 + $0xe8] sm:$0xff]
    %v60 = vld [vmem:[%s1 + $0xf0] sm:$0xff]
    %v61 = vld [vmem:[%s1 + $0xf8] sm:$0xff]
    %v62 = vld [vmem:[%s1 + $0x100] sm:$0xff]
    %v63 = vld [vmem:[%s1 + $0x108] sm:$0xff]
    %v64 = vld [vmem:[%s1 + $0x110] sm:$0xff]
    %v65 = vld [vmem:[%s1 + $0x118] sm:$0xff]
    %v66 = vld [vmem:[%s1 + $0x120] sm:$0xff]
    %v67 = vld [vmem:[%s1 + $0x128] sm:$0xff]
    %v68 = vld [vmem:[%s1 + $0x130] sm:$0xff]
    %v69 = vld [vmem:[%s1 + $0x138] sm:$0xff]
    %v70 = vld [vmem:[%s1 + $0x140] sm:$0xff]
    %v71 = vld [vmem:[%s1 + $0x148] sm:$0xff]
    %v72 = vld [vmem:[%s1 + $0x150] sm:$0xff]
    %v73 = vld [vmem:[%s1 + $0x158] sm:$0xff]
    %v74 = vld [vmem:[%s1 + $0x160] sm:$0xff]
    %v75 = vld [vmem:[%s1 + $0x168] sm:$0xff]
    %v76 = vld [vmem:[%s1 + $0x170] sm:$0xff]
    %v77 = vld [vmem:[%s1 + $0x178] sm:$0xff]
    %v78 = vld [vmem:[%s2] sm:$0x1]
    %v80 = vlaneseq
    %v81 = vshrl.u32 %v80, 7
    %v82 = vsub.s32 0, %v81
    %v83 = vrot.slane %v78, %v82
    %85 = vmatprep.subr.mxu0 0.0
    %86 = vmatpush1.msra.mxu0 %v30
    %87 = vmatprep.subr.mxu0 0.0
    %88 = vmatpush1.msra.mxu0 %v31
    %89 = vmatprep.subr.mxu0 0.0
    %90 = vmatpush1.msra.mxu0 %v32
    %91 = vmatprep.subr.mxu0 0.0
    %92 = vmatpush1.msra.mxu0 %v33
    %93 = vmatprep.subr.mxu0 0.0
    %94 = vmatpush1.msra.mxu0 %v34
    %95 = vmatprep.subr.mxu0 0.0
    %96 = vmatpush1.msra.mxu0 %v35
    %97 = vmatprep.subr.mxu0 0.0
    %98 = vmatpush1.msra.mxu0 %v36
    %99 = vmatprep.subr.mxu0 0.0
    %100 = vmatpush1.msra.mxu0 %v37
    %101 = vmatprep.subr.mxu0 0.0
    %102 = vmatpush1.msra.mxu0 %v38
    %103 = vmatprep.subr.mxu0 0.0
    %104 = vmatpush1.msra.mxu0 %v39
    %105 = vmatprep.subr.mxu0 0.0
    %106 = vmatpush1.msra.mxu0 %v40
    %107 = vmatprep.subr.mxu0 0.0
    %108 = vmatpush1.msra.mxu0 %v41
    %109 = vmatprep.subr.mxu0 0.0
    %110 = vmatpush1.msra.mxu0 %v42
    %111 = vmatprep.subr.mxu0 0.0
    %112 = vmatpush1.msra.mxu0 %v43
    %113 = vmatprep.subr.mxu0 0.0
    %114 = vmatpush1.msra.mxu0 %v44
    %115 = vmatprep.subr.mxu0 0.0
    %116 = vmatpush1.msra.mxu0 %v45
    %117 = vmatprep.subr.mxu0 0.0
    %118 = vmatpush1.msra.mxu0 %v46
    %119 = vmatprep.subr.mxu0 0.0
    %120 = vmatpush1.msra.mxu0 %v47
    %121 = vmatprep.subr.mxu0 0.0
    %122 = vmatpush1.msra.mxu0 %v48
    %123 = vmatprep.subr.mxu0 0.0
    %124 = vmatpush1.msra.mxu0 %v49
    %125 = vmatprep.subr.mxu0 0.0
    %126 = vmatpush1.msra.mxu0 %v50
    %127 = vmatprep.subr.mxu0 0.0
    %128 = vmatpush1.msra.mxu0 %v51
    %129 = vmatprep.subr.mxu0 0.0
    %130 = vmatpush1.msra.mxu0 %v52
    %131 = vmatprep.subr.mxu0 0.0
    %132 = vmatpush1.msra.mxu0 %v53
    %133 = vmatprep.subr.mxu0 0.0
    %134 = vmatpush1.msra.mxu0 %v54
    %135 = vmatprep.subr.mxu0 0.0
    %136 = vmatpush1.msra.mxu0 %v55
    %137 = vmatprep.subr.mxu0 0.0
    %138 = vmatpush1.msra.mxu0 %v56
    %139 = vmatprep.subr.mxu0 0.0
    %140 = vmatpush1.msra.mxu0 %v57
    %141 = vmatprep.subr.mxu0 0.0
    %142 = vmatpush1.msra.mxu0 %v58
    %143 = vmatprep.subr.mxu0 0.0
    %144 = vmatpush1.msra.mxu0 %v59
    %145 = vmatprep.subr.mxu0 0.0
    %146 = vmatpush1.msra.mxu0 %v60
    %147 = vmatprep.subr.mxu0 0.0
    %148 = vmatpush1.msra.mxu0 %v61
    %149 = vmatprep.mubr.f32.mxu0 %v28
    %150 = vmatmul.mubr.f32.gmra.mrb[0].mxu0 %v27
    %v151 = vpop.f32.mrb[0].mxu0
    %v152 = vadd.f32 %v83, %v151
    %v153 = vpop.f32.mrb[0].mxu0
    %154 = vdwg.mxu0
    %155 = vmatprep.subr.mxu0 0.0
    %156 = vmatpush1.msra.mxu0 %v62
    %157 = vmatprep.subr.mxu0 0.0
    %158 = vmatpush1.msra.mxu0 %v63
    %159 = vmatprep.subr.mxu0 0.0
    %160 = vmatpush1.msra.mxu0 %v64
    %161 = vmatprep.subr.mxu0 0.0
    %162 = vmatpush1.msra.mxu0 %v65
    %163 = vmatprep.subr.mxu0 0.0
    %164 = vmatpush1.msra.mxu0 %v66
    %165 = vmatprep.subr.mxu0 0.0
    %166 = vmatpush1.msra.mxu0 %v67
    %167 = vmatprep.subr.mxu0 0.0
    %168 = vmatpush1.msra.mxu0 %v68
    %169 = vmatprep.subr.mxu0 0.0
    %170 = vmatpush1.msra.mxu0 %v69
    %171 = vmatprep.subr.mxu0 0.0
    %172 = vmatpush1.msra.mxu0 %v70
    %173 = vmatprep.subr.mxu0 0.0
    %174 = vmatpush1.msra.mxu0 %v71
    %175 = vmatprep.subr.mxu0 0.0
    %176 = vmatpush1.msra.mxu0 %v72
    %177 = vmatprep.subr.mxu0 0.0
    %178 = vmatpush1.msra.mxu0 %v73
    %179 = vmatprep.subr.mxu0 0.0
    %180 = vmatpush1.msra.mxu0 %v74
    %181 = vmatprep.subr.mxu0 0.0
    %182 = vmatpush1.msra.mxu0 %v75
    %183 = vmatprep.subr.mxu0 0.0
    %184 = vmatpush1.msra.mxu0 %v76
    %185 = vmatprep.subr.mxu0 0.0
    %186 = vmatpush1.msra.mxu0 %v77
    %187 = vmatprep.subr.mxu0 0.0
    %188 = vmatpush1.msra.mxu0 0.0
    %189 = vmatprep.subr.mxu0 0.0
    %190 = vmatpush1.msra.mxu0 0.0
    %191 = vmatprep.subr.mxu0 0.0
    %192 = vmatpush1.msra.mxu0 0.0
    %193 = vmatprep.subr.mxu0 0.0
    %194 = vmatpush1.msra.mxu0 0.0
    %195 = vmatprep.subr.mxu0 0.0
    %196 = vmatpush1.msra.mxu0 0.0
    %197 = vmatprep.subr.mxu0 0.0
    %198 = vmatpush1.msra.mxu0 0.0
    %199 = vmatprep.subr.mxu0 0.0
    %200 = vmatpush1.msra.mxu0 0.0
    %201 = vmatprep.subr.mxu0 0.0
    %202 = vmatpush1.msra.mxu0 0.0
    %203 = vmatprep.subr.mxu0 0.0
    %204 = vmatpush1.msra.mxu0 0.0
    %205 = vmatprep.subr.mxu0 0.0
    %206 = vmatpush1.msra.mxu0 0.0
    %207 = vmatprep.subr.mxu0 0.0
    %208 = vmatpush1.msra.mxu0 0.0
    %209 = vmatprep.subr.mxu0 0.0
    %210 = vmatpush1.msra.mxu0 0.0
    %211 = vmatprep.subr.mxu0 0.0
    %212 = vmatpush1.msra.mxu0 0.0
    %213 = vmatprep.subr.mxu0 0.0
    %214 = vmatpush1.msra.mxu0 0.0
    %215 = vmatprep.subr.mxu0 0.0
    %216 = vmatpush1.msra.mxu0 0.0
    %217 = vmatprep.subr.mxu0 0.0
    %218 = vmatpush1.msra.mxu0 0.0
    %219 = vmatprep.mubr.f32.mxu0 0.0
    %220 = vmatmul.mubr.f32.gmra.mrb[0].mxu0 %v29
    %v221 = vpop.f32.mrb[0].mxu0
    %v222 = vadd.f32 %v152, %v221
    %v223 = vpop.f32.mrb[0].mxu0
    %224 = vdwg.mxu0
    %v225 = vmax.f32 %v222, 0.0
    %v226 = vld [vmem:[%s3] sm:$0xff]
    %v227 = vld [vmem:[%s3 + $0x8] sm:$0xff]
    %v228 = vld [vmem:[%s3 + $0x10] sm:$0xff]
    %v229 = vld [vmem:[%s3 + $0x18] sm:$0xff]
    %v230 = vld [vmem:[%s3 + $0x20] sm:$0xff]
    %v231 = vld [vmem:[%s3 + $0x28] sm:$0xff]
    %v232 = vld [vmem:[%s3 + $0x30] sm:$0xff]
    %v233 = vld [vmem:[%s3 + $0x38] sm:$0xff]
    %v234 = vld [vmem:[%s4] sm:$0x1]
    %v236 = vlaneseq
    %v237 = vshrl.u32 %v236, 7
    %v238 = vsub.s32 0, %v237
    %v239 = vrot.slane %v234, %v238
    %vm241 = vcmask 523264
    %v243 = vsel %vm241, %v225, 0
    %245 = vmatprep.subr.mxu0 0.0
    %246 = vmatpush1.msra.mxu0 %v226
    %247 = vmatprep.subr.mxu0 0.0
    %248 = vmatpush1.msra.mxu0 %v227
    %249 = vmatprep.subr.mxu0 0.0
    %250 = vmatpush1.msra.mxu0 %v228
    %251 = vmatprep.subr.mxu0 0.0
    %252 = vmatpush1.msra.mxu0 %v229
    %253 = vmatprep.subr.mxu0 0.0
    %254 = vmatpush1.msra.mxu0 %v230
    %255 = vmatprep.subr.mxu0 0.0
    %256 = vmatpush1.msra.mxu0 %v231
    %257 = vmatprep.subr.mxu0 0.0
    %258 = vmatpush1.msra.mxu0 %v232
    %259 = vmatprep.subr.mxu0 0.0
    %260 = vmatpush1.msra.mxu0 %v233
    %261 = vmatprep.subr.mxu0 0.0
    %262 = vmatpush1.msra.mxu0 0.0
    %263 = vmatprep.subr.mxu0 0.0
    %264 = vmatpush1.msra.mxu0 0.0
    %265 = vmatprep.subr.mxu0 0.0
    %266 = vmatpush1.msra.mxu0 0.0
    %267 = vmatprep.subr.mxu0 0.0
    %268 = vmatpush1.msra.mxu0 0.0
    %269 = vmatprep.subr.mxu0 0.0
    %270 = vmatpush1.msra.mxu0 0.0
    %271 = vmatprep.subr.mxu0 0.0
    %272 = vmatpush1.msra.mxu0 0.0
    %273 = vmatprep.subr.mxu0 0.0
    %274 = vmatpush1.msra.mxu0 0.0
    %275 = vmatprep.subr.mxu0 0.0
    %276 = vmatpush1.msra.mxu0 0.0
    %277 = vmatprep.subr.mxu0 0.0
    %278 = vmatpush1.msra.mxu0 0.0
    %279 = vmatprep.subr.mxu0 0.0
    %280 = vmatpush1.msra.mxu0 0.0
    %281 = vmatprep.subr.mxu0 0.0
    %282 = vmatpush1.msra.mxu0 0.0
    %283 = vmatprep.subr.mxu0 0.0
    %284 = vmatpush1.msra.mxu0 0.0
    %285 = vmatprep.subr.mxu0 0.0
    %286 = vmatpush1.msra.mxu0 0.0
    %287 = vmatprep.subr.mxu0 0.0
    %288 = vmatpush1.msra.mxu0 0.0
    %289 = vmatprep.subr.mxu0 0.0
    %290 = vmatpush1.msra.mxu0 0.0
    %291 = vmatprep.subr.mxu0 0.0
    %292 = vmatpush1.msra.mxu0 0.0
    %293 = vmatprep.subr.mxu0 0.0
    %294 = vmatpush1.msra.mxu0 0.0
    %295 = vmatprep.subr.mxu0 0.0
    %296 = vmatpush1.msra.mxu0 0.0
    %297 = vmatprep.subr.mxu0 0.0
    %298 = vmatpush1.msra.mxu0 0.0
    %299 = vmatprep.subr.mxu0 0.0
    %300 = vmatpush1.msra.mxu0 0.0
    %301 = vmatprep.subr.mxu0 0.0
    %302 = vmatpush1.msra.mxu0 0.0
    %303 = vmatprep.subr.mxu0 0.0
    %304 = vmatpush1.msra.mxu0 0.0
    %305 = vmatprep.subr.mxu0 0.0
    %306 = vmatpush1.msra.mxu0 0.0
    %307 = vmatprep.subr.mxu0 0.0
    %308 = vmatpush1.msra.mxu0 0.0
    %309 = vmatprep.mubr.f32.mxu0 0.0
    %310 = vmatmul.mubr.f32.gmra.mrb[0].mxu0 %v243
    %v311 = vpop.f32.mrb[0].mxu0
    %v312 = vadd.f32 %v239, %v311
    %v313 = vpop.f32.mrb[0].mxu0
    %314 = vdwg.mxu0
    %v315 = vmax.f32 %v312, 0.0
    %v316 = vld [vmem:[%s5] sm:$0xff]
    %v317 = vld [vmem:[%s5 + $0x8] sm:$0xff]
    %v318 = vld [vmem:[%s5 + $0x10] sm:$0xff]
    %v319 = vld [vmem:[%s5 + $0x18] sm:$0xff]
    %v320 = vld [vmem:[%s5 + $0x20] sm:$0xff]
    %v321 = vld [vmem:[%s5 + $0x28] sm:$0xff]
    %v322 = vld [vmem:[%s5 + $0x30] sm:$0xff]
    %v323 = vld [vmem:[%s5 + $0x38] sm:$0xff]
    %v324 = vld [vmem:[%s6] sm:$0x1]
    %v326 = vlaneseq
    %v327 = vshrl.u32 %v326, 7
    %v328 = vsub.s32 0, %v327
    %v329 = vrot.slane %v324, %v328
    %v332 = vsel %vm241, %v315, 0
    %334 = vmatprep.subr.mxu0 0.0
    %335 = vmatpush1.msra.mxu0 %v316
    %336 = vmatprep.subr.mxu0 0.0
    %337 = vmatpush1.msra.mxu0 %v317
    %338 = vmatprep.subr.mxu0 0.0
    %339 = vmatpush1.msra.mxu0 %v318
    %340 = vmatprep.subr.mxu0 0.0
    %341 = vmatpush1.msra.mxu0 %v319
    %342 = vmatprep.subr.mxu0 0.0
    %343 = vmatpush1.msra.mxu0 %v320
    %344 = vmatprep.subr.mxu0 0.0
    %345 = vmatpush1.msra.mxu0 %v321
    %346 = vmatprep.subr.mxu0 0.0
    %347 = vmatpush1.msra.mxu0 %v322
    %348 = vmatprep.subr.mxu0 0.0
    %349 = vmatpush1.msra.mxu0 %v323
    %350 = vmatprep.subr.mxu0 0.0
    %351 = vmatpush1.msra.mxu0 0.0
    %352 = vmatprep.subr.mxu0 0.0
    %353 = vmatpush1.msra.mxu0 0.0
    %354 = vmatprep.subr.mxu0 0.0
    %355 = vmatpush1.msra.mxu0 0.0
    %356 = vmatprep.subr.mxu0 0.0
    %357 = vmatpush1.msra.mxu0 0.0
    %358 = vmatprep.subr.mxu0 0.0
    %359 = vmatpush1.msra.mxu0 0.0
    %360 = vmatprep.subr.mxu0 0.0
    %361 = vmatpush1.msra.mxu0 0.0
    %362 = vmatprep.subr.mxu0 0.0
    %363 = vmatpush1.msra.mxu0 0.0
    %364 = vmatprep.subr.mxu0 0.0
    %365 = vmatpush1.msra.mxu0 0.0
    %366 = vmatprep.subr.mxu0 0.0
    %367 = vmatpush1.msra.mxu0 0.0
    %368 = vmatprep.subr.mxu0 0.0
    %369 = vmatpush1.msra.mxu0 0.0
    %370 = vmatprep.subr.mxu0 0.0
    %371 = vmatpush1.msra.mxu0 0.0
    %372 = vmatprep.subr.mxu0 0.0
    %373 = vmatpush1.msra.mxu0 0.0
    %374 = vmatprep.subr.mxu0 0.0
    %375 = vmatpush1.msra.mxu0 0.0
    %376 = vmatprep.subr.mxu0 0.0
    %377 = vmatpush1.msra.mxu0 0.0
    %378 = vmatprep.subr.mxu0 0.0
    %379 = vmatpush1.msra.mxu0 0.0
    %380 = vmatprep.subr.mxu0 0.0
    %381 = vmatpush1.msra.mxu0 0.0
    %382 = vmatprep.subr.mxu0 0.0
    %383 = vmatpush1.msra.mxu0 0.0
    %384 = vmatprep.subr.mxu0 0.0
    %385 = vmatpush1.msra.mxu0 0.0
    %386 = vmatprep.subr.mxu0 0.0
    %387 = vmatpush1.msra.mxu0 0.0
    %388 = vmatprep.subr.mxu0 0.0
    %389 = vmatpush1.msra.mxu0 0.0
    %390 = vmatprep.subr.mxu0 0.0
    %391 = vmatpush1.msra.mxu0 0.0
    %392 = vmatprep.subr.mxu0 0.0
    %393 = vmatpush1.msra.mxu0 0.0
    %394 = vmatprep.subr.mxu0 0.0
    %395 = vmatpush1.msra.mxu0 0.0
    %396 = vmatprep.subr.mxu0 0.0
    %397 = vmatpush1.msra.mxu0 0.0
    %398 = vmatprep.mubr.f32.mxu0 0.0
    %399 = vmatmul.mubr.f32.gmra.mrb[0].mxu0 %v332
    %v400 = vpop.f32.mrb[0].mxu0
    %v401 = vadd.f32 %v329, %v400
    %v402 = vpop.f32.mrb[0].mxu0
    %403 = vdwg.mxu0
    %v404 = vxor.u32 %v401, 2147483648
    %v405 = vmul.f32 %v404, 1.442695
    %v406 = vpow.pop %v405
    %v407 = vadd.f32 %v406, 1.0
    %v408 = vrcp.pop %v407
    %v409 = vmul.f32 1.0, %v408
    %410 = vst [vmem:[#allocation2] sm:$0xff] %v409
    // Predicated region
    $region30: #{tpu_custom_call.1} parent=1 // pred_check
      _
    $region31: #{tpu_custom_call.1} parent=1 // pred_check_branch
      %412 = sbr.rel (0) target = $region33
    $region32: #{tpu_custom_call.1} parent=1 // pred_region
      %s414 = ssub.s32 128, 128
      %415 = vsyncadd [#allocation3], %s414
      %s417 = sshll.u32 [#allocation2], 4
      %s418 = int_to_ptr.vmem [resolvable:$true] %s417
      %420 = dma.vmem_to_hbm [thread:$0]  %s418, 128, %s7, [#allocation3]
    $region33: #{tpu_custom_call.1} parent=1 // pred_fallthru
      _
    // Predicated region
    $region34: #{tpu_custom_call.1} parent=1 // pred_check
      _
    $region35: #{tpu_custom_call.1} parent=1 // pred_check_branch
      %422 = sbr.rel (0) target = $region37
    $region36: #{tpu_custom_call.1} parent=1 // pred_region
      %423 = dma.done [#allocation3], 128
    $region37: #{tpu_custom_call.1} parent=1 // pred_fallthru
      _
    %424 = vsyncpa [#allocation3], 1

</llo_original>
